<compile_context>
chip_gen: v6e
topology: v6e:2x2x1
jax: 0.10.0
libtpu: 0.0.40
codegen_flags: <defaults>
</compile_context>

<pallas_src>
import functools

import jax
import jax.numpy as jnp
from jax.experimental import pallas as pl
from jax.experimental.pallas import tpu as pltpu

_LANES = 128
_PAD_LOGIT = -1.0e4            # sigmoid(pad) == 0 -> padded elements contribute 0
_PRED_BLOCK_BYTES = 2 << 20    # target pred-block bytes per pipeline buffer
_MAX_BLOCK_ROWS = 1024


def _topo_bce_dice_kernel(pred_ref, tgt_ref, part_ref, *, num_channels):
    """One (sample, row-block) grid step.

    pred_ref: (1, c, R, 128) logits in native dtype.
    tgt_ref : (1, R, 128) float32 nearest-resized single-channel target.
    part_ref: (1, 4, 128) float32 per-sample per-lane partial sums
              [sum p*t, sum p*p, sum t*t, sum bce], resident across the
              row-block (reduction) axis; finalized in plain JAX.
    """
    @pl.when(pl.program_id(1) == 0)
    def _():
        part_ref[...] = jnp.zeros_like(part_ref)

    # Channel max on logits in native dtype; upcast only the reduced plane.
    xmax = pred_ref[0, 0, :, :]
    for ci in range(1, num_channels):
        xmax = jnp.maximum(xmax, pred_ref[0, ci, :, :])
    x = xmax.astype(jnp.float32)                          # (R, 128)
    t = tgt_ref[0, :, :]                                  # (R, 128) float32

    # Shared-exp, numerically-stable sigmoid + logit-space BCE terms.
    em = jnp.exp(-jnp.abs(x))                             # single EUP exp
    p = jnp.where(x >= 0, 1.0, em) / (1.0 + em)           # sigmoid(x)
    s = jnp.maximum(-x, 0.0) + jnp.log(1.0 + em)          # softplus(-x) = -log(sigmoid(x))
    log_p = jnp.maximum(-s, -100.0)                       # torch BCELoss log clamp
    log_1mp = jnp.maximum(-x - s, -100.0)
    bce = -(t * log_p + (1.0 - t) * log_1mp)

    # Per-lane partials only (sublane reduce); the cross-lane reduce happens
    # once in JAX on the tiny (bs, 4, 128) output.
    part_ref[0, 0:1, :] += jnp.sum(p * t, axis=0, keepdims=True)
    part_ref[0, 1:2, :] += jnp.sum(p * p, axis=0, keepdims=True)
    part_ref[0, 2:3, :] += jnp.sum(t * t, axis=0, keepdims=True)
    part_ref[0, 3:4, :] += jnp.sum(bce, axis=0, keepdims=True)


def _nearest_resize_nchw(x, out_h, out_w):
    # torch F.interpolate(mode='nearest'): src_idx = floor(dst_idx * in / out)
    in_h, in_w = x.shape[-2], x.shape[-1]
    if (in_h, in_w) == (out_h, out_w):
        return x
    ih = (jnp.arange(out_h) * in_h) // out_h
    iw = (jnp.arange(out_w) * in_w) // out_w
    # TODO(synk): fold the nearest resize into the target index_map via scalar
    # prefetch so the resized target is never materialized in HBM.
    return x[:, :, ih[:, None], iw[None, :]]


def _pick_block_rows(num_channels, itemsize):
    r = _PRED_BLOCK_BYTES // max(1, num_channels * _LANES * itemsize)
    r = (r // 8) * 8
    return int(max(8, min(_MAX_BLOCK_ROWS, r)))


def topology_bce_dice_loss(pred, target, *, use_sigmoid=True, eps=1e-3,
                           weight=(0.5, 0.5)):
    """pred: (bs, c, h, w) logits; target: (bs, 1, Ht, Wt). Returns scalar loss."""
    assert use_sigmoid  # sigmoid is fused into the kernel
    bs, c, h, w = pred.shape
    s = h * w

    tgt = _nearest_resize_nchw(target, h, w).astype(jnp.float32).reshape(bs, s)
    pred_flat = pred.reshape(bs, c, s)                    # native dtype on the wire

    rows = -(-s // _LANES)
    r_cap = _pick_block_rows(c, jnp.dtype(pred.dtype).itemsize)
    if rows <= r_cap:
        r_blk = rows                                      # full-extent block (always legal)
        rows_pad = rows
    else:
        r_blk = r_cap                                     # multiple of 8
        rows_pad = -(-rows // r_blk) * r_blk
    s_pad = rows_pad * _LANES
    if s_pad != s:
        pred_flat = jnp.pad(pred_flat, ((0, 0), (0, 0), (0, s_pad - s)),
                            constant_values=_PAD_LOGIT)
        tgt = jnp.pad(tgt, ((0, 0), (0, s_pad - s)))

    pred4 = pred_flat.reshape(bs, c, rows_pad, _LANES)    # lane-dense spatial tiles
    tgt3 = tgt.reshape(bs, rows_pad, _LANES)
    n_rblk = rows_pad // r_blk

    kernel = functools.partial(_topo_bce_dice_kernel, num_channels=c)
    parts = pl.pallas_call(
        kernel,
        out_shape=jax.ShapeDtypeStruct((bs, 4, _LANES), jnp.float32),
        grid_spec=pltpu.PrefetchScalarGridSpec(
            num_scalar_prefetch=0,
            grid=(bs, n_rblk),
            in_specs=[
                pl.BlockSpec((1, c, r_blk, _LANES), lambda b, r: (b, 0, r, 0)),
                pl.BlockSpec((1, r_blk, _LANES), lambda b, r: (b, r, 0)),
            ],
            out_specs=pl.BlockSpec((1, 4, _LANES), lambda b, r: (b, 0, 0)),
        ),
        compiler_params=pltpu.CompilerParams(
            dimension_semantics=("parallel", "arbitrary")),
    )(pred4, tgt3)

    sums = jnp.sum(parts, axis=-1)                        # (bs, 4) final lane reduce
    a_s, b_s, c_s, bce_s = sums[:, 0], sums[:, 1], sums[:, 2], sums[:, 3]
    # V-Net dice: d = 2a / (sum(p^2)+eps + sum(t^2)+eps), mean over batch.
    dice = jnp.mean(1.0 - 2.0 * a_s / (b_s + eps + c_s + eps))
    # torch BCELoss 'mean' over all (bs, 1, h, w) elements (unpadded count).
    bce = jnp.sum(bce_s) / (bs * s)
    return weight[0] * dice + weight[1] * bce


def _reference(pred, target, eps=1e-3, weight=(0.5, 0.5)):
    """Plain-JAX transcription of the PyTorch TopologyBceDiceLoss forward."""
    bs, c, h, w = pred.shape
    p = jnp.max(jax.nn.sigmoid(pred.astype(jnp.float32)), axis=1)        # (bs, h, w)
    t = _nearest_resize_nchw(target, h, w).astype(jnp.float32)[:, 0]     # (bs, h, w)
    pf = p.reshape(bs, -1)
    tf = t.reshape(bs, -1)
    a = jnp.sum(pf * tf, axis=1)
    b = jnp.sum(pf * pf, axis=1) + eps
    cden = jnp.sum(tf * tf, axis=1) + eps
    dice = jnp.mean(1.0 - 2.0 * a / (b + cden))
    log_p = jnp.maximum(jnp.log(pf), -100.0)
    log_1mp = jnp.maximum(jnp.log(1.0 - pf), -100.0)
    bce = jnp.mean(-(tf * log_p + (1.0 - tf) * log_1mp))
    return weight[0] * dice + weight[1] * bce


if __name__ == "__main__":
    key = jax.random.PRNGKey(0)
    k1, k2 = jax.random.split(key)
    bs, c, h, w = 2, 4, 16, 16
    pred = jax.random.normal(k1, (bs, c, h, w), dtype=jnp.float32)
    # binary mask target at a different spatial size to exercise nearest resize
    target = (jax.random.uniform(k2, (bs, 1, 32, 32)) > 0.5).astype(jnp.float32)

    loss = jax.jit(topology_bce_dice_loss)(pred, target)
    jax.block_until_ready(loss)
    ref = _reference(pred, target)

    assert loss.shape == () and bool(jnp.isfinite(loss))
    assert bool(jnp.allclose(loss, ref, rtol=1e-4, atol=1e-4)), (loss, ref)
    print("KERNEL_OK")
</pallas_src>

<mosaic_0001>
module attributes {stable_mosaic.version = 11 : i64} {
  func.func @_topo_bce_dice_kernel(%arg0: i32, %arg1: i32, %arg2: memref<1x4x2x128xf32, #tpu.memory_space<vmem>>, %arg3: memref<1x2x128xf32, #tpu.memory_space<vmem>>, %arg4: memref<1x4x128xf32, #tpu.memory_space<vmem>>) attributes {dimension_semantics = [#tpu.dimension_semantics<parallel>, #tpu.dimension_semantics<arbitrary>], iteration_bounds = array<i64: 2, 1>, scalar_prefetch = 0 : i64, scratch_operands = 0 : i64, tpu.core_type = #tpu.core_type<tc>, window_params = [{transform_indices = @transform_0, window_bounds = array<i64: 1, 4, 2, 128>}, {transform_indices = @transform_1, window_bounds = array<i64: 1, 2, 128>}, {transform_indices = @transform_2, window_bounds = array<i64: 1, 4, 128>}]} {
    %c0_i32 = arith.constant 0 : i32
    %0 = arith.cmpi eq, %arg1, %c0_i32 : i32
    %1 = arith.extui %0 : i1 to i32
    %c0_i32_0 = arith.constant 0 : i32
    %2 = arith.cmpi ne, %1, %c0_i32_0 : i32
    scf.if %2 {
      %cst_56 = arith.constant 0.000000e+00 : f32
      %86 = vector.broadcast %cst_56 : f32 to vector<1x4x128xf32>
      %c0_57 = arith.constant 0 : index
      %c0_58 = arith.constant 0 : index
      %c0_59 = arith.constant 0 : index
      %87 = vector.load %arg4[%c0_57, %c0_58, %c0_59] : memref<1x4x128xf32, #tpu.memory_space<vmem>>, vector<1x4x128xf32>
      tpu.vector_store %arg4[%c0_57, %c0_58, %c0_59], %86 {strides = array<i32>} : memref<1x4x128xf32, #tpu.memory_space<vmem>>, vector<1x4x128xf32>,
    } else {
    }
    %c0 = arith.constant 0 : index
    %c0_1 = arith.constant 0 : index
    %c0_2 = arith.constant 0 : index
    %c0_3 = arith.constant 0 : index
    %3 = vector.load %arg2[%c0, %c0_1, %c0_2, %c0_3] : memref<1x4x2x128xf32, #tpu.memory_space<vmem>>, vector<1x1x2x128xf32>
    %4 = vector.shape_cast %3 : vector<1x1x2x128xf32> to vector<2x128xf32>
    %c0_4 = arith.constant 0 : index
    %c1 = arith.constant 1 : index
    %c0_5 = arith.constant 0 : index
    %c0_6 = arith.constant 0 : index
    %5 = vector.load %arg2[%c0_4, %c1, %c0_5, %c0_6] : memref<1x4x2x128xf32, #tpu.memory_space<vmem>>, vector<1x1x2x128xf32>
    %6 = vector.shape_cast %5 : vector<1x1x2x128xf32> to vector<2x128xf32>
    %7 = arith.maximumf %4, %6 : vector<2x128xf32>
    %c0_7 = arith.constant 0 : index
    %c2 = arith.constant 2 : index
    %c0_8 = arith.constant 0 : index
    %c0_9 = arith.constant 0 : index
    %8 = vector.load %arg2[%c0_7, %c2, %c0_8, %c0_9] : memref<1x4x2x128xf32, #tpu.memory_space<vmem>>, vector<1x1x2x128xf32>
    %9 = vector.shape_cast %8 : vector<1x1x2x128xf32> to vector<2x128xf32>
    %10 = arith.maximumf %7, %9 : vector<2x128xf32>
    %c0_10 = arith.constant 0 : index
    %c3 = arith.constant 3 : index
    %c0_11 = arith.constant 0 : index
    %c0_12 = arith.constant 0 : index
    %11 = vector.load %arg2[%c0_10, %c3, %c0_11, %c0_12] : memref<1x4x2x128xf32, #tpu.memory_space<vmem>>, vector<1x1x2x128xf32>
    %12 = vector.shape_cast %11 : vector<1x1x2x128xf32> to vector<2x128xf32>
    %13 = arith.maximumf %10, %12 : vector<2x128xf32>
    %c0_13 = arith.constant 0 : index
    %c0_14 = arith.constant 0 : index
    %c0_15 = arith.constant 0 : index
    %14 = vector.load %arg3[%c0_13, %c0_14, %c0_15] : memref<1x2x128xf32, #tpu.memory_space<vmem>>, vector<1x2x128xf32>
    %15 = vector.shape_cast %14 : vector<1x2x128xf32> to vector<2x128xf32>
    %16 = math.absf %13 : vector<2x128xf32>
    %cst = arith.constant 0.000000e+00 : f32
    %17 = vector.broadcast %cst : f32 to vector<2x128xf32>
    %18 = arith.subf %17, %16 : vector<2x128xf32>
    %19 = math.exp %18 : vector<2x128xf32>
    %cst_16 = arith.constant 0.000000e+00 : f32
    %20 = vector.broadcast %cst_16 : f32 to vector<2x128xf32>
    %21 = arith.cmpf oge, %13, %20 : vector<2x128xf32>
    %cst_17 = arith.constant 1.000000e+00 : f32
    %22 = vector.broadcast %cst_17 : f32 to vector<2x128xf32>
    %23 = arith.select %21, %22, %19 : vector<2x128xi1>, vector<2x128xf32>
    %cst_18 = arith.constant 1.000000e+00 : f32
    %24 = vector.broadcast %cst_18 : f32 to vector<2x128xf32>
    %25 = arith.addf %24, %19 : vector<2x128xf32>
    %26 = arith.divf %23, %25 : vector<2x128xf32>
    %cst_19 = arith.constant 0.000000e+00 : f32
    %27 = vector.broadcast %cst_19 : f32 to vector<2x128xf32>
    %28 = arith.subf %27, %13 : vector<2x128xf32>
    %cst_20 = arith.constant 0.000000e+00 : f32
    %29 = vector.broadcast %cst_20 : f32 to vector<2x128xf32>
    %30 = arith.maximumf %28, %29 : vector<2x128xf32>
    %cst_21 = arith.constant 1.000000e+00 : f32
    %31 = vector.broadcast %cst_21 : f32 to vector<2x128xf32>
    %32 = arith.addf %31, %19 : vector<2x128xf32>
    %33 = math.log %32 : vector<2x128xf32>
    %34 = arith.addf %30, %33 : vector<2x128xf32>
    %cst_22 = arith.constant 0.000000e+00 : f32
    %35 = vector.broadcast %cst_22 : f32 to vector<2x128xf32>
    %36 = arith.subf %35, %34 : vector<2x128xf32>
    %cst_23 = arith.constant -1.000000e+02 : f32
    %37 = vector.broadcast %cst_23 : f32 to vector<2x128xf32>
    %38 = arith.maximumf %36, %37 : vector<2x128xf32>
    %cst_24 = arith.constant 0.000000e+00 : f32
    %39 = vector.broadcast %cst_24 : f32 to vector<2x128xf32>
    %40 = arith.subf %39, %13 : vector<2x128xf32>
    %41 = arith.subf %40, %34 : vector<2x128xf32>
    %cst_25 = arith.constant -1.000000e+02 : f32
    %42 = vector.broadcast %cst_25 : f32 to vector<2x128xf32>
    %43 = arith.maximumf %41, %42 : vector<2x128xf32>
    %44 = arith.mulf %15, %38 : vector<2x128xf32>
    %cst_26 = arith.constant 1.000000e+00 : f32
    %45 = vector.broadcast %cst_26 : f32 to vector<2x128xf32>
    %46 = arith.subf %45, %15 : vector<2x128xf32>
    %47 = arith.mulf %46, %43 : vector<2x128xf32>
    %48 = arith.addf %44, %47 : vector<2x128xf32>
    %cst_27 = arith.constant 0.000000e+00 : f32
    %49 = vector.broadcast %cst_27 : f32 to vector<2x128xf32>
    %50 = arith.subf %49, %48 : vector<2x128xf32>
    %c0_28 = arith.constant 0 : index
    %c0_29 = arith.constant 0 : index
    %c0_30 = arith.constant 0 : index
    %51 = vector.load %arg4[%c0_28, %c0_29, %c0_30] : memref<1x4x128xf32, #tpu.memory_space<vmem>>, vector<1x1x128xf32>
    %52 = vector.shape_cast %51 : vector<1x1x128xf32> to vector<1x128xf32>
    %53 = arith.mulf %26, %15 : vector<2x128xf32>
    %cst_31 = arith.constant dense<0.000000e+00> : vector<128xf32>
    %54 = vector.multi_reduction <add>, %53, %cst_31 [0] : vector<2x128xf32> to vector<128xf32>
    %55 = vector.shape_cast %54 : vector<128xf32> to vector<1x128xf32>
    %56 = arith.addf %52, %55 : vector<1x128xf32>
    %c0_32 = arith.constant 0 : index
    %c0_33 = arith.constant 0 : index
    %c0_34 = arith.constant 0 : index
    %57 = vector.load %arg4[%c0_32, %c0_33, %c0_34] : memref<1x4x128xf32, #tpu.memory_space<vmem>>, vector<1x1x128xf32>
    %58 = vector.shape_cast %57 : vector<1x1x128xf32> to vector<1x128xf32>
    %59 = vector.shape_cast %56 : vector<1x128xf32> to vector<1x1x128xf32>
    tpu.vector_store %arg4[%c0_32, %c0_33, %c0_34], %59 {strides = array<i32>} : memref<1x4x128xf32, #tpu.memory_space<vmem>>, vector<1x1x128xf32>,
    %c0_35 = arith.constant 0 : index
    %c1_36 = arith.constant 1 : index
    %c0_37 = arith.constant 0 : index
    %60 = vector.load %arg4[%c0_35, %c1_36, %c0_37] : memref<1x4x128xf32, #tpu.memory_space<vmem>>, vector<1x1x128xf32>
    %61 = vector.shape_cast %60 : vector<1x1x128xf32> to vector<1x128xf32>
    %62 = arith.mulf %26, %26 : vector<2x128xf32>
    %cst_38 = arith.constant dense<0.000000e+00> : vector<128xf32>
    %63 = vector.multi_reduction <add>, %62, %cst_38 [0] : vector<2x128xf32> to vector<128xf32>
    %64 = vector.shape_cast %63 : vector<128xf32> to vector<1x128xf32>
    %65 = arith.addf %61, %64 : vector<1x128xf32>
    %c0_39 = arith.constant 0 : index
    %c1_40 = arith.constant 1 : index
    %c0_41 = arith.constant 0 : index
    %66 = vector.load %arg4[%c0_39, %c1_40, %c0_41] : memref<1x4x128xf32, #tpu.memory_space<vmem>>, vector<1x1x128xf32>
    %67 = vector.shape_cast %66 : vector<1x1x128xf32> to vector<1x128xf32>
    %68 = vector.shape_cast %65 : vector<1x128xf32> to vector<1x1x128xf32>
    tpu.vector_store %arg4[%c0_39, %c1_40, %c0_41], %68 {strides = array<i32>} : memref<1x4x128xf32, #tpu.memory_space<vmem>>, vector<1x1x128xf32>,
    %c0_42 = arith.constant 0 : index
    %c2_43 = arith.constant 2 : index
    %c0_44 = arith.constant 0 : index
    %69 = vector.load %arg4[%c0_42, %c2_43, %c0_44] : memref<1x4x128xf32, #tpu.memory_space<vmem>>, vector<1x1x128xf32>
    %70 = vector.shape_cast %69 : vector<1x1x128xf32> to vector<1x128xf32>
    %71 = arith.mulf %15, %15 : vector<2x128xf32>
    %cst_45 = arith.constant dense<0.000000e+00> : vector<128xf32>
    %72 = vector.multi_reduction <add>, %71, %cst_45 [0] : vector<2x128xf32> to vector<128xf32>
    %73 = vector.shape_cast %72 : vector<128xf32> to vector<1x128xf32>
    %74 = arith.addf %70, %73 : vector<1x128xf32>
    %c0_46 = arith.constant 0 : index
    %c2_47 = arith.constant 2 : index
    %c0_48 = arith.constant 0 : index
    %75 = vector.load %arg4[%c0_46, %c2_47, %c0_48] : memref<1x4x128xf32, #tpu.memory_space<vmem>>, vector<1x1x128xf32>
    %76 = vector.shape_cast %75 : vector<1x1x128xf32> to vector<1x128xf32>
    %77 = vector.shape_cast %74 : vector<1x128xf32> to vector<1x1x128xf32>
    tpu.vector_store %arg4[%c0_46, %c2_47, %c0_48], %77 {strides = array<i32>} : memref<1x4x128xf32, #tpu.memory_space<vmem>>, vector<1x1x128xf32>,
    %c0_49 = arith.constant 0 : index
    %c3_50 = arith.constant 3 : index
    %c0_51 = arith.constant 0 : index
    %78 = vector.load %arg4[%c0_49, %c3_50, %c0_51] : memref<1x4x128xf32, #tpu.memory_space<vmem>>, vector<1x1x128xf32>
    %79 = vector.shape_cast %78 : vector<1x1x128xf32> to vector<1x128xf32>
    %cst_52 = arith.constant dense<0.000000e+00> : vector<128xf32>
    %80 = vector.multi_reduction <add>, %50, %cst_52 [0] : vector<2x128xf32> to vector<128xf32>
    %81 = vector.shape_cast %80 : vector<128xf32> to vector<1x128xf32>
    %82 = arith.addf %79, %81 : vector<1x128xf32>
    %c0_53 = arith.constant 0 : index
    %c3_54 = arith.constant 3 : index
    %c0_55 = arith.constant 0 : index
    %83 = vector.load %arg4[%c0_53, %c3_54, %c0_55] : memref<1x4x128xf32, #tpu.memory_space<vmem>>, vector<1x1x128xf32>
    %84 = vector.shape_cast %83 : vector<1x1x128xf32> to vector<1x128xf32>
    %85 = vector.shape_cast %82 : vector<1x128xf32> to vector<1x1x128xf32>
    tpu.vector_store %arg4[%c0_53, %c3_54, %c0_55], %85 {strides = array<i32>} : memref<1x4x128xf32, #tpu.memory_space<vmem>>, vector<1x1x128xf32>,
    return
  }
  func.func @transform_0(%arg0: i32, %arg1: i32) -> (i32, i32, i32, i32) {
    %c0_i32 = arith.constant 0 : i32
    %c0_i32_0 = arith.constant 0 : i32
    %c0_i32_1 = arith.constant 0 : i32
    return %arg0, %c0_i32, %arg1, %c0_i32_0 : i32, i32, i32, i32
  }
  func.func @transform_1(%arg0: i32, %arg1: i32) -> (i32, i32, i32) {
    %c0_i32 = arith.constant 0 : i32
    %c0_i32_0 = arith.constant 0 : i32
    return %arg0, %arg1, %c0_i32 : i32, i32, i32
  }
  func.func @transform_2(%arg0: i32, %arg1: i32) -> (i32, i32, i32) {
    %c0_i32 = arith.constant 0 : i32
    %c0_i32_0 = arith.constant 0 : i32
    %c0_i32_1 = arith.constant 0 : i32
    return %arg0, %c0_i32, %c0_i32_0 : i32, i32, i32
  }
}

</mosaic_0001>

<llo_original>
// kernel: topology_bce_dice_loss.1
$region0: #{topology_bce_dice_loss.1}
  #allocation0 [shape = 'u32[]', space=smem, size = 0x4, offset = 0x4, fixed_abs, tag = 'smem constant byte address 0x4 - core index']
  #allocation1 [shape = 'u32[144,128]{1,0:T(1,128)}', space=vmem, size = 0x12000, scoped, tag = 'internal scratch']
  %s0 = inlined_call_operand.vmem [shape: f32[2,4,2,128], index: 0, kind: input, shape index: {}]
  %s1 = inlined_call_operand.vmem [shape: f32[2,2,128], index: 1, kind: input, shape index: {}]
  %s2 = inlined_call_operand.vmem [shape: f32[2,4,128], index: 2, kind: output, shape index: {}]
  %s3 = sld [smem:[#allocation0]]
  $region45: #{topology_bce_dice_loss.1} parent=0
    _
  %s5 = ssub.s32 1, %s3
  %s6 = scalar_select 0, %s5, %s3
  loop: start=0, step=1, limit=4
  $region2: #{topology_bce_dice_loss.1} parent=0 // loop_pre_header
    _
  $region3: #{topology_bce_dice_loss.1} parent=0 // loop_header
    %s8 = sphi 0, %s12
    %p9 = scmp.ge.s32.totalorder %s8, 4
    %s15 = sphi 0, %s27
    %s16 = sphi 0, %s23
    %s17 = sphi 0, %s15
    %s18 = sphi 0, %s16
    %s19 = sphi 0, %s17
    %s20 = sphi 0, %s18
    %s32 = sphi 0, %s34
    %s35 = sphi 0, %s32
    %s36 = sphi 0, %s35
    %s52 = sphi 0, %s36
    %s60 = sphi 0, %s62
    %s63 = sphi 0, %s60
    %s64 = sphi 0, %s63
    %s80 = sphi 0, %s64
    %s86 = sphi 0, %s88
    %s89 = sphi 0, %s86
    %s90 = sphi 0, %s89
    %s106 = sphi 0, %s90
  $region4: #{topology_bce_dice_loss.1} parent=0 // loop_header_branch
    %11 = sbr.rel (%p9) target = $region8
  $region5: #{topology_bce_dice_loss.1} parent=0 // loop_body
    %s13 = ssub.s32 %s8, 1
    %s14 = ssub.s32 %s8, 2
    %s21 = sadd.s32 1, %s16
    %p22 = scmp.ge.s32.totalorder %s21, 1
    %s23 = scalar_select %p22, 0, %s21
    %s24 = sadd.s32 1, %s15
    %s25 = scalar_select %p22, %s24, %s15
    %p26 = scmp.ge.s32.totalorder %s25, 2
    %s27 = scalar_select %p26, 0, %s25
    %s28 = ssub.s32 %s15, %s27
    %s29 = ssub.s32 %s16, %s23
    %s30 = sor.u32 %s28, %s29
    %p31 = scmp.eq.s32.totalorder %s30, 0
    %s33 = sadd.s32 %s32, 1
    %s34 = scalar_select %p31, %s32, %s33
    %p37 = pneg %p31
    %p38 = scmp.eq.s32.totalorder %s8, 1
    %p39 = por %p37, %p38
    %p40 = scmp.ne.s32.totalorder %s32, %s35
    %p41 = scmp.eq.s32.totalorder %s8, 0
    %p42 = por %p40, %p41
    %p43 = scmp.ne.s32.totalorder %s32, %s35
    %p44 = scmp.eq.s32.totalorder %s13, 1
    %p45 = por %p43, %p44
    %p46 = scmp.ne.s32.totalorder %s35, %s36
    %p47 = scmp.eq.s32.totalorder %s13, 0
    %p48 = por %p46, %p47
    %p49 = scmp.ne.s32.totalorder %s35, %s36
    %p50 = scmp.eq.s32.totalorder %s14, 1
    %p51 = por %p49, %p50
    %p53 = scmp.ne.s32.totalorder %s36, %s52
    %p54 = scmp.eq.s32.totalorder %s14, 0
    %p55 = por %p53, %p54
    %s56 = ssub.s32 %s15, %s27
    %s57 = ssub.s32 %s16, %s23
    %s58 = sor.u32 %s56, %s57
    %p59 = scmp.eq.s32.totalorder %s58, 0
    %s61 = sadd.s32 %s60, 1
    %s62 = scalar_select %p59, %s60, %s61
    %p65 = pneg %p59
    %p66 = scmp.eq.s32.totalorder %s8, 1
    %p67 = por %p65, %p66
    %p68 = scmp.ne.s32.totalorder %s60, %s63
    %p69 = scmp.eq.s32.totalorder %s8, 0
    %p70 = por %p68, %p69
    %p71 = scmp.ne.s32.totalorder %s60, %s63
    %p72 = scmp.eq.s32.totalorder %s13, 1
    %p73 = por %p71, %p72
    %p74 = scmp.ne.s32.totalorder %s63, %s64
    %p75 = scmp.eq.s32.totalorder %s13, 0
    %p76 = por %p74, %p75
    %p77 = scmp.ne.s32.totalorder %s63, %s64
    %p78 = scmp.eq.s32.totalorder %s14, 1
    %p79 = por %p77, %p78
    %p81 = scmp.ne.s32.totalorder %s64, %s80
    %p82 = scmp.eq.s32.totalorder %s14, 0
    %p83 = por %p81, %p82
    %s84 = ssub.s32 %s15, %s27
    %p85 = scmp.eq.s32.totalorder %s84, 0
    %s87 = sadd.s32 %s86, 1
    %s88 = scalar_select %p85, %s86, %s87
    %p91 = pneg %p85
    %p92 = scmp.eq.s32.totalorder %s8, 1
    %p93 = por %p91, %p92
    %p94 = scmp.ne.s32.totalorder %s86, %s89
    %p95 = scmp.eq.s32.totalorder %s8, 0
    %p96 = por %p94, %p95
    %p97 = scmp.ne.s32.totalorder %s86, %s89
    %p98 = scmp.eq.s32.totalorder %s13, 1
    %p99 = por %p97, %p98
    %p100 = scmp.ne.s32.totalorder %s89, %s90
    %p101 = scmp.eq.s32.totalorder %s13, 0
    %p102 = por %p100, %p101
    %p103 = scmp.ne.s32.totalorder %s89, %s90
    %p104 = scmp.eq.s32.totalorder %s14, 1
    %p105 = por %p103, %p104
    %p107 = scmp.ne.s32.totalorder %s90, %s106
    %p108 = scmp.eq.s32.totalorder %s14, 0
    %p109 = por %p107, %p108
    %p110 = scmp.le.s32.totalorder 1, %s8
    %p111 = scmp.lt.s32.totalorder %s8, 3
    %p112 = pnand %p110, %p111
    %p113 = pneg %p112
    // Predicated region
    $region9: #{topology_bce_dice_loss.1} parent=5 // pred_check
      _
    $region10: #{topology_bce_dice_loss.1} parent=5 // pred_check_branch
      %115 = sbr.rel (%p112) target = $region12
    $region11: #{topology_bce_dice_loss.1} parent=5 // pred_region
      %s116 = ssub.s32 %s8, 1
    $region12: #{topology_bce_dice_loss.1} parent=5 // pred_fallthru
      _
    %p117 = scmp.lt.s32.totalorder %s8, 2
    // Predicated region
    $region13: #{topology_bce_dice_loss.1} parent=5 // pred_check
      %p118 = pneg %p117
    $region14: #{topology_bce_dice_loss.1} parent=5 // pred_check_branch
      %120 = sbr.rel (%p118) target = $region16
    $region15: #{topology_bce_dice_loss.1} parent=5 // pred_region
      // Predicated region
      $region17: #{topology_bce_dice_loss.1} parent=15 // pred_check
        %p121 = pneg %p42
      $region18: #{topology_bce_dice_loss.1} parent=15 // pred_check_branch
        %123 = sbr.rel (%p121) target = $region20
      $region19: #{topology_bce_dice_loss.1} parent=15 // pred_region
        %p124 = scmp.lt.s32.totalorder %s15, 1
        %s125 = scalar_select %p124, %s15, 1
        %p126 = scmp.lt.s32.totalorder %s16, 0
        %s127 = scalar_select %p126, %s16, 0
        %s128 = smul.addr %s125, 4
        %s129 = sadd.s32 %s127, %s128
        %s130 = smul.addr %s129, 2
        %s131 = scalar_lea.vmem %s0, %s130
      $region20: #{topology_bce_dice_loss.1} parent=15 // pred_fallthru
        _
      // Predicated region
      $region21: #{topology_bce_dice_loss.1} parent=15 // pred_check
        %p132 = pneg %p70
      $region22: #{topology_bce_dice_loss.1} parent=15 // pred_check_branch
        %134 = sbr.rel (%p132) target = $region24
      $region23: #{topology_bce_dice_loss.1} parent=15 // pred_region
        %p135 = scmp.lt.s32.totalorder %s15, 1
        %s136 = scalar_select %p135, %s15, 1
        %p137 = scmp.lt.s32.totalorder %s16, 0
        %s138 = scalar_select %p137, %s16, 0
        %s139 = sadd.s32 %s138, %s136
        %s140 = smul.addr %s139, 2
        %s141 = scalar_lea.vmem %s1, %s140
      $region24: #{topology_bce_dice_loss.1} parent=15 // pred_fallthru
        _
    $region16: #{topology_bce_dice_loss.1} parent=5 // pred_fallthru
      _
    %p142 = scmp.le.s32.totalorder 1, %s8
    %p143 = scmp.lt.s32.totalorder %s8, 3
    %p144 = pnand %p142, %p143
    %p145 = pneg %p144
    // Predicated region
    $region25: #{topology_bce_dice_loss.1} parent=5 // pred_check
      _
    $region26: #{topology_bce_dice_loss.1} parent=5 // pred_check_branch
      %147 = sbr.rel (%p144) target = $region28
    $region27: #{topology_bce_dice_loss.1} parent=5 // pred_region
      %s148 = ssub.s32 %s8, 1
      %p149 = scmp.lt.s32.totalorder %s17, 1
      %s150 = scalar_select %p149, %s17, 1
      %p151 = scmp.lt.s32.totalorder %s18, 0
      %s152 = scalar_select %p151, %s18, 0
      %s153 = smul.addr %s150, 4
      %s154 = sadd.s32 %s152, %s153
      %s155 = smul.addr %s154, 2
      %s156 = scalar_lea.vmem %s0, %s155
      %p157 = pneg %p48
      %p158 = pneg %p45
      %p159 = scmp.lt.s32.totalorder %s17, 1
      %s160 = scalar_select %p159, %s17, 1
      %p161 = scmp.lt.s32.totalorder %s18, 0
      %s162 = scalar_select %p161, %s18, 0
      %s163 = sadd.s32 %s162, %s160
      %s164 = smul.addr %s163, 2
      %s165 = scalar_lea.vmem %s1, %s164
      %p166 = pneg %p76
      %p167 = pneg %p73
      %p168 = pneg %p102
      %p169 = pneg %p99
      %p170 = scmp.lt.s32.totalorder %s17, 1
      %s171 = scalar_select %p170, %s17, 1
      %s172 = smul.addr %s171, 4
      %s173 = scalar_lea.vmem %s2, %s172
      %p174 = scmp.lt.s32.totalorder %s17, 1
      %s175 = scalar_select %p174, %s17, 1
      %p176 = scmp.lt.s32.totalorder %s18, 0
      %s177 = scalar_select %p176, %s18, 0
      %s178 = smul.addr %s175, 4
      %s179 = sadd.s32 %s177, %s178
      %s180 = smul.addr %s179, 2
      %s181 = scalar_lea.vmem %s0, %s180
      %p182 = scmp.lt.s32.totalorder %s17, 1
      %s183 = scalar_select %p182, %s17, 1
      %p184 = scmp.lt.s32.totalorder %s18, 0
      %s185 = scalar_select %p184, %s18, 0
      %s186 = sadd.s32 %s185, %s183
      %s187 = smul.addr %s186, 2
      %s188 = scalar_lea.vmem %s1, %s187
      %p189 = scmp.lt.s32.totalorder %s17, 1
      %s190 = scalar_select %p189, %s17, 1
      %s191 = smul.addr %s190, 4
      %s192 = scalar_lea.vmem %s2, %s191
      %p193 = scmp.eq.s32.totalorder %s18, 0
      // Predicated region
      $region29: #{topology_bce_dice_loss.1} parent=27 // pred_check
        %p194 = pneg %p193
      $region30: #{topology_bce_dice_loss.1} parent=27 // pred_check_branch
        %196 = sbr.rel (%p194) target = $region32
      $region31: #{topology_bce_dice_loss.1} parent=27 // pred_region
        %197 = vst [vmem:[%s192] sm:$0xf] 0.0
      $region32: #{topology_bce_dice_loss.1} parent=27 // pred_fallthru
        _
      %v198 = vld [vmem:[%s181] sm:$0x3]
      %s199 = scalar_lea.vmem %s181, 2
      %v200 = vld [vmem:[%s199] sm:$0x3]
      %v201 = vmax.f32 %v198, %v200
      %s202 = scalar_lea.vmem %s181, 4
      %v203 = vld [vmem:[%s202] sm:$0x3]
      %v204 = vmax.f32 %v201, %v203
      %s205 = scalar_lea.vmem %s181, 6
      %v206 = vld [vmem:[%s205] sm:$0x3]
      %v207 = vmax.f32 %v204, %v206
      %v208 = vld [vmem:[%s188] sm:$0x3]
      %v209 = vand.u32 2147483647, %v207
      %v210 = vsub.f32 0.0, %v209
      %v211 = vmul.f32 %v210, 1.442695
      %v212 = vpow.pop %v211
      %vm213 = vcmp.ge.f32.partialorder %v207, 0.0
      %v214 = vsel %vm213, 1.0, %v212
      %v215 = vadd.f32 %v212, 1.0
      %v216 = vrcp.pop %v215
      %v217 = vmul.f32 %v214, %v216
      %v218 = vsub.f32 0.0, %v207
      %v219 = vmax.f32 %v218, 0.0
      %v220 = vlog2.pop %v215
      %v221 = vmul.f32 %v220, 0.6931472
      %v222 = vadd.f32 %v219, %v221
      %v223 = vsub.f32 0.0, %v222
      %v224 = vmax.f32 %v223, -100.0
      %v225 = vsub.f32 %v218, %v222
      %v226 = vmax.f32 %v225, -100.0
      %v227 = vmul.f32 %v208, %v224
      %v228 = vsub.f32 1.0, %v208
      %v229 = vmul.f32 %v228, %v226
      %v230 = vadd.f32 %v227, %v229
      %v231 = vsub.f32 0.0, %v230
      %v232 = vld [vmem:[%s192] sm:$0x1]
      %v233 = vmul.f32 %v217, %v208
      %vm234 = vcmask 1041408
      %v235 = vsel %vm234, %v233, 0.0
      %v236 = vrot.slane %v235, 4
      %v237 = vadd.f32 %v235, %v236
      %v238 = vrot.slane %v237, 2
      %v239 = vadd.f32 %v237, %v238
      %v240 = vrot.slane %v239, 1
      %v241 = vadd.f32 %v239, %v240
      %v242 = vadd.f32 %v232, %v241
      %243 = vst [vmem:[%s192] sm:$0x1] %v242
      %v244 = vld [vmem:[%s192 + $0x1] sm:$0x1]
      %v245 = vmul.f32 %v217, %v217
      %v246 = vsel %vm234, %v245, 0.0
      %v247 = vrot.slane %v246, 4
      %v248 = vadd.f32 %v246, %v247
      %v249 = vrot.slane %v248, 2
      %v250 = vadd.f32 %v248, %v249
      %v251 = vrot.slane %v250, 1
      %v252 = vadd.f32 %v250, %v251
      %v253 = vadd.f32 %v244, %v252
      %254 = vst [vmem:[%s192 + $0x1] sm:$0x1] %v253
      %v255 = vld [vmem:[%s192 + $0x2] sm:$0x1]
      %v256 = vmul.f32 %v208, %v208
      %v257 = vsel %vm234, %v256, 0.0
      %v258 = vrot.slane %v257, 4
      %v259 = vadd.f32 %v257, %v258
      %v260 = vrot.slane %v259, 2
      %v261 = vadd.f32 %v259, %v260
      %v262 = vrot.slane %v261, 1
      %v263 = vadd.f32 %v261, %v262
      %v264 = vadd.f32 %v255, %v263
      %265 = vst [vmem:[%s192 + $0x2] sm:$0x1] %v264
      %v266 = vld [vmem:[%s192 + $0x3] sm:$0x1]
      %v267 = vsel %vm234, %v231, 0.0
      %v268 = vrot.slane %v267, 4
      %v269 = vadd.f32 %v267, %v268
      %v270 = vrot.slane %v269, 2
      %v271 = vadd.f32 %v269, %v270
      %v272 = vrot.slane %v271, 1
      %v273 = vadd.f32 %v271, %v272
      %v274 = vadd.f32 %v266, %v273
      %275 = vst [vmem:[%s192 + $0x3] sm:$0x1] %v274
      %p276 = scmp.lt.s32.totalorder %s17, 1
      %s277 = scalar_select %p276, %s17, 1
      %s278 = smul.addr %s277, 4
      %s279 = scalar_lea.vmem %s2, %s278
      // Predicated region
      $region33: #{topology_bce_dice_loss.1} parent=27 // pred_check
        %p280 = pneg %p99
      $region34: #{topology_bce_dice_loss.1} parent=27 // pred_check_branch
        %282 = sbr.rel (%p280) target = $region36
      $region35: #{topology_bce_dice_loss.1} parent=27 // pred_region
        _
      $region36: #{topology_bce_dice_loss.1} parent=27 // pred_fallthru
        _
    $region28: #{topology_bce_dice_loss.1} parent=5 // pred_fallthru
      _
    %p283 = scmp.le.s32.totalorder 2, %s8
    // Predicated region
    $region37: #{topology_bce_dice_loss.1} parent=5 // pred_check
      %p284 = pneg %p283
    $region38: #{topology_bce_dice_loss.1} parent=5 // pred_check_branch
      %286 = sbr.rel (%p284) target = $region40
    $region39: #{topology_bce_dice_loss.1} parent=5 // pred_region
      %s287 = ssub.s32 %s8, 2
      // Predicated region
      $region41: #{topology_bce_dice_loss.1} parent=39 // pred_check
        %p288 = pneg %p105
      $region42: #{topology_bce_dice_loss.1} parent=39 // pred_check_branch
        %290 = sbr.rel (%p288) target = $region44
      $region43: #{topology_bce_dice_loss.1} parent=39 // pred_region
        %p291 = scmp.lt.s32.totalorder %s19, 1
        %s292 = scalar_select %p291, %s19, 1
        %s293 = smul.addr %s292, 4
        %s294 = scalar_lea.vmem %s2, %s293
      $region44: #{topology_bce_dice_loss.1} parent=39 // pred_fallthru
        _
    $region40: #{topology_bce_dice_loss.1} parent=5 // pred_fallthru
      _
  $region6: #{topology_bce_dice_loss.1} parent=0 // loop_footer
    %s12 = sadd.s32 1, %s8
  $region7: #{topology_bce_dice_loss.1} parent=0 // loop_footer_branch
    %7 = sbr.rel target = $region3
  $region8: #{topology_bce_dice_loss.1} parent=0 // loop_exit
    _

</llo_original>
